<compile_context>
chip_gen: v7x
topology: tpu7x:2x2x1
jax: 0.10.0
libtpu: 0.0.40
codegen_flags: <defaults>
</compile_context>

<pallas_src>
import jax
import jax.numpy as jnp
from jax.experimental import pallas as pl
from jax.experimental.pallas import tpu as pltpu

LEAKY_SLOPE = 0.01  # PyTorch nn.LeakyReLU default negative_slope


def _make_mlp_sigmoid_kernel(n_parts):
    """Kernel over one row tile: sigmoid(leaky_relu(sum_k x_k @ W1_k + b1) @ W2 + b2)."""

    def kernel(*refs):
        xs = refs[:n_parts]                       # each (tm, d_k), input dtype
        w1s = refs[n_parts:2 * n_parts]           # each (d_k, D_in), bf16
        b1_ref, w2_ref, b2_ref, o_ref = refs[2 * n_parts:2 * n_parts + 4]

        # First linear: accumulate the concatenated matmul part-by-part (f32 acc).
        h = jnp.dot(xs[0][...].astype(jnp.bfloat16), w1s[0][...],
                    preferred_element_type=jnp.float32)
        for k in range(1, n_parts):
            h = h + jnp.dot(xs[k][...].astype(jnp.bfloat16), w1s[k][...],
                            preferred_element_type=jnp.float32)
        h = h + b1_ref[...]                       # (tm, D_in) + (1, D_in), f32
        h = jnp.where(h > 0, h, LEAKY_SLOPE * h)  # LeakyReLU in f32 (VPU)

        # Second linear + sigmoid.
        y = jnp.dot(h.astype(jnp.bfloat16), w2_ref[...],
                    preferred_element_type=jnp.float32)
        y = y + b2_ref[...]                       # (tm, D_tgt) + (1, D_tgt)
        o_ref[...] = jax.nn.sigmoid(y).astype(o_ref.dtype)

    return kernel


def _round_up(x, m):
    return ((x + m - 1) // m) * m


def corrector_controller_forward(inp, params, *, tm_max=1024):
    """inp: tuple of (B,S,*) arrays (concatenated on last dim) or a single (B,S,D) array."""
    parts = inp if isinstance(inp, tuple) else (inp,)
    n_parts = len(parts)
    B, S = parts[0].shape[:2]
    dims = [p.shape[2] for p in parts]
    D_in = sum(dims)

    w1, b1, w2, b2 = params
    assert w1.shape[0] == D_in
    D_tgt = w2.shape[1]

    M = B * S
    xs = [p.reshape(M, d) for p, d in zip(parts, dims)]

    # Split W1 along its input axis so the kernel never needs the concatenated x.
    w1_parts = []
    off = 0
    for d in dims:
        w1_parts.append(w1[off:off + d, :])
        off += d

    # Row tile: multiple of 8 (f32 sublanes), large enough to amortize the
    # ~0.35 us/step pipeline overhead, and >= 2 grid steps so v7x's second
    # TensorCore gets work.  VMEM stays small (<1 MiB double-buffered at 1024).
    tm = max(8, min(tm_max, _round_up(pl.cdiv(M, 2), 8)))
    grid = (pl.cdiv(M, tm),)

    in_specs = (
        [pl.BlockSpec((tm, d), lambda i: (i, 0)) for d in dims] +          # x tiles
        [pl.BlockSpec((d, D_in), lambda i: (0, 0)) for d in dims] +        # W1 parts (resident)
        [pl.BlockSpec((1, D_in), lambda i: (0, 0)),                        # b1
         pl.BlockSpec((D_in, D_tgt), lambda i: (0, 0)),                    # W2 (resident)
         pl.BlockSpec((1, D_tgt), lambda i: (0, 0))]                       # b2
    )

    out = pl.pallas_call(
        _make_mlp_sigmoid_kernel(n_parts),
        out_shape=jax.ShapeDtypeStruct((M, D_tgt), parts[0].dtype),
        grid_spec=pltpu.PrefetchScalarGridSpec(
            num_scalar_prefetch=0,
            grid=grid,
            in_specs=in_specs,
            out_specs=pl.BlockSpec((tm, D_tgt), lambda i: (i, 0)),
        ),
        compiler_params=pltpu.CompilerParams(
            dimension_semantics=("parallel",)),
    )(*xs, *w1_parts, b1, w2, b2)

    return out.reshape(B, S, D_tgt)


def init_params(key, input_dim, target_dim):
    """nn.Linear-shaped params stored as (in, out); weights in bf16, biases in f32."""
    k1, k2, k3, k4 = jax.random.split(key, 4)
    s1 = 1.0 / jnp.sqrt(input_dim)
    w1 = jax.random.uniform(k1, (input_dim, input_dim), jnp.float32, -s1, s1)
    b1 = jax.random.uniform(k2, (1, input_dim), jnp.float32, -s1, s1)
    w2 = jax.random.uniform(k3, (input_dim, target_dim), jnp.float32, -s1, s1)
    b2 = jax.random.uniform(k4, (1, target_dim), jnp.float32, -s1, s1)
    return w1.astype(jnp.bfloat16), b1, w2.astype(jnp.bfloat16), b2


def _reference(inp, params):
    """Plain-JAX reference with the same bf16-operand / f32-accumulate matmuls."""
    parts = inp if isinstance(inp, tuple) else (inp,)
    x = jnp.concatenate(parts, axis=2) if len(parts) > 1 else parts[0]
    w1, b1, w2, b2 = params
    h = jnp.dot(x.astype(jnp.bfloat16), w1, preferred_element_type=jnp.float32) + b1
    h = jnp.where(h > 0, h, LEAKY_SLOPE * h)
    y = jnp.dot(h.astype(jnp.bfloat16), w2, preferred_element_type=jnp.float32) + b2
    return jax.nn.sigmoid(y)


def _reference_f32(inp, params):
    """Pure-f32 reference (matches the PyTorch module numerics more closely)."""
    parts = inp if isinstance(inp, tuple) else (inp,)
    x = jnp.concatenate(parts, axis=2) if len(parts) > 1 else parts[0]
    w1, b1, w2, b2 = params
    h = x @ w1.astype(jnp.float32) + b1
    h = jnp.where(h > 0, h, LEAKY_SLOPE * h)
    return jax.nn.sigmoid(h @ w2.astype(jnp.float32) + b2)


if __name__ == "__main__":
    hidden_dim, embed_dim, target_dim = 32, 32, 16
    input_dim = hidden_dim + embed_dim   # 'hidden_and_input'

    key = jax.random.PRNGKey(0)
    k_h, k_e, k_p, k_h2, k_e2 = jax.random.split(key, 5)
    params = init_params(k_p, input_dim, target_dim)

    # Case 1: tile-aligned row count (M = 16, grid of 2 steps).
    B, S = 2, 8
    hidden = jax.random.normal(k_h, (B, S, hidden_dim), jnp.float32)
    embed = jax.random.normal(k_e, (B, S, embed_dim), jnp.float32)
    out = jax.block_until_ready(corrector_controller_forward((hidden, embed), params))
    assert out.shape == (B, S, target_dim)
    assert jnp.allclose(out, _reference((hidden, embed), params), atol=1e-3, rtol=1e-3)
    assert jnp.allclose(out, _reference_f32((hidden, embed), params), atol=3e-2)

    # Case 2: non-tile-aligned rows (M = 15) -> exercises the masked partial block.
    B2, S2 = 3, 5
    hidden2 = jax.random.normal(k_h2, (B2, S2, hidden_dim), jnp.float32)
    embed2 = jax.random.normal(k_e2, (B2, S2, embed_dim), jnp.float32)
    out2 = jax.block_until_ready(corrector_controller_forward((hidden2, embed2), params))
    assert out2.shape == (B2, S2, target_dim)
    assert jnp.allclose(out2, _reference((hidden2, embed2), params), atol=1e-3, rtol=1e-3)

    print("KERNEL_OK")
</pallas_src>

<mosaic_0001>
module attributes {stable_mosaic.version = 11 : i64} {
  func.func @kernel(%arg0: i32, %arg1: memref<8x32xf32, #tpu.memory_space<vmem>>, %arg2: memref<8x32xf32, #tpu.memory_space<vmem>>, %arg3: memref<32x64xbf16, #tpu.memory_space<vmem>>, %arg4: memref<32x64xbf16, #tpu.memory_space<vmem>>, %arg5: memref<1x64xf32, #tpu.memory_space<vmem>>, %arg6: memref<64x16xbf16, #tpu.memory_space<vmem>>, %arg7: memref<1x16xf32, #tpu.memory_space<vmem>>, %arg8: memref<8x16xf32, #tpu.memory_space<vmem>>) attributes {dimension_semantics = [#tpu.dimension_semantics<parallel>], iteration_bounds = array<i64: 2>, scalar_prefetch = 0 : i64, scratch_operands = 0 : i64, tpu.core_type = #tpu.core_type<tc>, window_params = [{transform_indices = @transform_0, window_bounds = array<i64: 8, 32>}, {transform_indices = @transform_1, window_bounds = array<i64: 8, 32>}, {pipeline_mode = #tpu.pipeline_mode<synchronous>, transform_indices = @transform_2, window_bounds = array<i64: 32, 64>}, {pipeline_mode = #tpu.pipeline_mode<synchronous>, transform_indices = @transform_3, window_bounds = array<i64: 32, 64>}, {pipeline_mode = #tpu.pipeline_mode<synchronous>, transform_indices = @transform_4, window_bounds = array<i64: 1, 64>}, {pipeline_mode = #tpu.pipeline_mode<synchronous>, transform_indices = @transform_5, window_bounds = array<i64: 64, 16>}, {pipeline_mode = #tpu.pipeline_mode<synchronous>, transform_indices = @transform_6, window_bounds = array<i64: 1, 16>}, {transform_indices = @transform_7, window_bounds = array<i64: 8, 16>}]} {
    %c0 = arith.constant 0 : index
    %c0_0 = arith.constant 0 : index
    %0 = vector.load %arg1[%c0, %c0_0] : memref<8x32xf32, #tpu.memory_space<vmem>>, vector<8x32xf32>
    %1 = arith.truncf %0 : vector<8x32xf32> to vector<8x32xbf16>
    %c0_1 = arith.constant 0 : index
    %c0_2 = arith.constant 0 : index
    %2 = vector.load %arg3[%c0_1, %c0_2] : memref<32x64xbf16, #tpu.memory_space<vmem>>, vector<32x64xbf16>
    %cst = arith.constant dense<0.000000e+00> : vector<8x64xf32>
    %3 = tpu.matmul %1, %2, %cst {dimension_numbers = #tpu.dot_dimension_numbers<[1], [0], [0], [1], [0, 0, 1, 1], [], []>} : vector<8x32xbf16>, vector<32x64xbf16>, vector<8x64xf32> -> vector<8x64xf32>
    %c0_3 = arith.constant 0 : index
    %c0_4 = arith.constant 0 : index
    %4 = vector.load %arg2[%c0_3, %c0_4] : memref<8x32xf32, #tpu.memory_space<vmem>>, vector<8x32xf32>
    %5 = arith.truncf %4 : vector<8x32xf32> to vector<8x32xbf16>
    %c0_5 = arith.constant 0 : index
    %c0_6 = arith.constant 0 : index
    %6 = vector.load %arg4[%c0_5, %c0_6] : memref<32x64xbf16, #tpu.memory_space<vmem>>, vector<32x64xbf16>
    %cst_7 = arith.constant dense<0.000000e+00> : vector<8x64xf32>
    %7 = tpu.matmul %5, %6, %cst_7 {dimension_numbers = #tpu.dot_dimension_numbers<[1], [0], [0], [1], [0, 0, 1, 1], [], []>} : vector<8x32xbf16>, vector<32x64xbf16>, vector<8x64xf32> -> vector<8x64xf32>
    %8 = arith.addf %3, %7 : vector<8x64xf32>
    %c0_8 = arith.constant 0 : index
    %c0_9 = arith.constant 0 : index
    %9 = vector.load %arg5[%c0_8, %c0_9] : memref<1x64xf32, #tpu.memory_space<vmem>>, vector<1x64xf32>
    %10 = vector.broadcast %9 : vector<1x64xf32> to vector<8x64xf32>
    %11 = arith.addf %8, %10 : vector<8x64xf32>
    %cst_10 = arith.constant 0.000000e+00 : f32
    %12 = vector.broadcast %cst_10 : f32 to vector<8x64xf32>
    %13 = arith.cmpf ogt, %11, %12 : vector<8x64xf32>
    %cst_11 = arith.constant 0.00999999977 : f32
    %14 = vector.broadcast %cst_11 : f32 to vector<8x64xf32>
    %15 = arith.mulf %14, %11 : vector<8x64xf32>
    %16 = arith.select %13, %11, %15 : vector<8x64xi1>, vector<8x64xf32>
    %17 = arith.truncf %16 : vector<8x64xf32> to vector<8x64xbf16>
    %c0_12 = arith.constant 0 : index
    %c0_13 = arith.constant 0 : index
    %18 = vector.load %arg6[%c0_12, %c0_13] : memref<64x16xbf16, #tpu.memory_space<vmem>>, vector<64x16xbf16>
    %cst_14 = arith.constant dense<0.000000e+00> : vector<8x16xf32>
    %19 = tpu.matmul %17, %18, %cst_14 {dimension_numbers = #tpu.dot_dimension_numbers<[1], [0], [0], [1], [0, 0, 1, 1], [], []>} : vector<8x64xbf16>, vector<64x16xbf16>, vector<8x16xf32> -> vector<8x16xf32>
    %c0_15 = arith.constant 0 : index
    %c0_16 = arith.constant 0 : index
    %20 = vector.load %arg7[%c0_15, %c0_16] : memref<1x16xf32, #tpu.memory_space<vmem>>, vector<1x16xf32>
    %21 = vector.broadcast %20 : vector<1x16xf32> to vector<8x16xf32>
    %22 = arith.addf %19, %21 : vector<8x16xf32>
    %23 = arith.negf %22 : vector<8x16xf32>
    %24 = math.exp %23 : vector<8x16xf32>
    %cst_17 = arith.constant 1.000000e+00 : f32
    %25 = vector.broadcast %cst_17 : f32 to vector<8x16xf32>
    %26 = arith.addf %25, %24 : vector<8x16xf32>
    %27 = arith.divf %25, %26 : vector<8x16xf32>
    %c0_18 = arith.constant 0 : index
    %c0_19 = arith.constant 0 : index
    %28 = vector.load %arg8[%c0_18, %c0_19] : memref<8x16xf32, #tpu.memory_space<vmem>>, vector<8x16xf32>
    tpu.vector_store %arg8[%c0_18, %c0_19], %27 {strides = array<i32>} : memref<8x16xf32, #tpu.memory_space<vmem>>, vector<8x16xf32>,
    return
  }
  func.func @transform_0(%arg0: i32) -> (i32, i32) {
    %c0_i32 = arith.constant 0 : i32
    %c0_i32_0 = arith.constant 0 : i32
    return %arg0, %c0_i32 : i32, i32
  }
  func.func @transform_1(%arg0: i32) -> (i32, i32) {
    %c0_i32 = arith.constant 0 : i32
    %c0_i32_0 = arith.constant 0 : i32
    return %arg0, %c0_i32 : i32, i32
  }
  func.func @transform_2(%arg0: i32) -> (i32, i32) {
    %c0_i32 = arith.constant 0 : i32
    %c0_i32_0 = arith.constant 0 : i32
    %c0_i32_1 = arith.constant 0 : i32
    return %c0_i32, %c0_i32_0 : i32, i32
  }
  func.func @transform_3(%arg0: i32) -> (i32, i32) {
    %c0_i32 = arith.constant 0 : i32
    %c0_i32_0 = arith.constant 0 : i32
    %c0_i32_1 = arith.constant 0 : i32
    return %c0_i32, %c0_i32_0 : i32, i32
  }
  func.func @transform_4(%arg0: i32) -> (i32, i32) {
    %c0_i32 = arith.constant 0 : i32
    %c0_i32_0 = arith.constant 0 : i32
    %c0_i32_1 = arith.constant 0 : i32
    return %c0_i32, %c0_i32_0 : i32, i32
  }
  func.func @transform_5(%arg0: i32) -> (i32, i32) {
    %c0_i32 = arith.constant 0 : i32
    %c0_i32_0 = arith.constant 0 : i32
    %c0_i32_1 = arith.constant 0 : i32
    return %c0_i32, %c0_i32_0 : i32, i32
  }
  func.func @transform_6(%arg0: i32) -> (i32, i32) {
    %c0_i32 = arith.constant 0 : i32
    %c0_i32_0 = arith.constant 0 : i32
    %c0_i32_1 = arith.constant 0 : i32
    return %c0_i32, %c0_i32_0 : i32, i32
  }
  func.func @transform_7(%arg0: i32) -> (i32, i32) {
    %c0_i32 = arith.constant 0 : i32
    %c0_i32_0 = arith.constant 0 : i32
    return %arg0, %c0_i32 : i32, i32
  }
}

</mosaic_0001>

<llo_original>
// kernel: tpu_custom_call.1
$region0: #{tpu_custom_call.1}
  #allocation0 [shape = 'u32[]', space=smem, size = 0x4, offset = 0x4, fixed_abs, tag = 'smem constant byte address 0x4 - core index']
  #allocation1 [shape = 'u32[144,128]{1,0:T(1,128)}', space=vmem, size = 0x12000, scoped, tag = 'internal scratch']
  %s0 = inlined_call_operand.vmem [shape: f32[16,32], index: 0, kind: input, shape index: {}]
  %s1 = inlined_call_operand.vmem [shape: f32[16,32], index: 1, kind: input, shape index: {}]
  %s2 = inlined_call_operand.hbm [shape: bf16[32,64], index: 2, kind: input, shape index: {}]
  %s3 = inlined_call_operand.vmem [shape: bf16[32,64], index: 3, kind: input, shape index: {}]
  %s4 = inlined_call_operand.vmem [shape: f32[1,64], index: 4, kind: input, shape index: {}]
  %s5 = inlined_call_operand.vmem [shape: bf16[64,16], index: 5, kind: input, shape index: {}]
  %s6 = inlined_call_operand.vmem [shape: f32[1,16], index: 6, kind: input, shape index: {}]
  %s7 = inlined_call_operand.hbm [shape: f32[16,16], index: 7, kind: output, shape index: {}]
  %s8 = sld [smem:[#allocation0]]
  $region65: #{tpu_custom_call.1} parent=0
    _
  %s10 = ssub.s32 1, %s8
  %s11 = scalar_select 0, %s10, %s8
  $region1: #{tpu_custom_call.1} parent=0
    #allocation2 [shape = 'u8[8192]{0}', space=vmem, size = 0x2000, scoped, tag = 'input window, operand 2, single buffered']
    #allocation3 [shape = 's32[2]{0}', space=sflag, size = 0x8, scoped, tag = 'scoped memory for tpu_custom_call.1']
    #allocation4 [shape = 's32[2]{0}', space=sflag, size = 0x8, scoped, tag = 'scoped memory for tpu_custom_call.1']
    #allocation5 [shape = 'u8[8192]{0}', space=vmem, size = 0x2000, scoped, tag = 'output window, operand 0']
    %12 = vsyncpa [#allocation3], 0
    %13 = vsyncpa [#allocation4], 0
    %s14 = scalar_lea.sflag [#allocation4], 1
    %15 = vsyncpa %s14, 0
    loop: start=0, step=1, limit=4
    $region2: #{tpu_custom_call.1} parent=1 // loop_pre_header
      _
    $region3: #{tpu_custom_call.1} parent=1 // loop_header
      %s17 = sphi 0, %s21
      %p18 = scmp.ge.s32.totalorder %s17, 4
      %s27 = sphi 0, %s29
      %s30 = sphi 0, %s27
      %s31 = sphi 0, %s30
      %s47 = sphi 0, %s31
      %s53 = sphi 0, %s55
      %s56 = sphi 0, %s53
      %s57 = sphi 0, %s56
      %s73 = sphi 0, %s57
      %s77 = sphi 0, %s77
      %s79 = sphi 0, %s77
      %s80 = sphi 0, %s79
      %s94 = sphi 0, %s80
      %s98 = sphi 0, %s98
      %s100 = sphi 0, %s98
      %s101 = sphi 0, %s100
      %s115 = sphi 0, %s101
      %s119 = sphi 0, %s119
      %s121 = sphi 0, %s119
      %s122 = sphi 0, %s121
      %s136 = sphi 0, %s122
      %s140 = sphi 0, %s140
      %s142 = sphi 0, %s140
      %s143 = sphi 0, %s142
      %s157 = sphi 0, %s143
      %s161 = sphi 0, %s161
      %s163 = sphi 0, %s161
      %s164 = sphi 0, %s163
      %s178 = sphi 0, %s164
      %s184 = sphi 0, %s186
      %s187 = sphi 0, %s184
      %s188 = sphi 0, %s187
      %s204 = sphi 0, %s188
    $region4: #{tpu_custom_call.1} parent=1 // loop_header_branch
      %20 = sbr.rel (%p18) target = $region8
    $region5: #{tpu_custom_call.1} parent=1 // loop_body
      %s22 = ssub.s32 %s17, 1
      %s23 = ssub.s32 %s17, 2
      %s24 = sadd.s32 %s17, 1
      %s25 = ssub.s32 %s17, %s24
      %p26 = scmp.eq.s32.totalorder %s25, 0
      %s28 = sadd.s32 %s27, 1
      %s29 = scalar_select %p26, %s27, %s28
      %p32 = pneg %p26
      %p33 = scmp.eq.s32.totalorder %s17, 1
      %p34 = por %p32, %p33
      %p35 = scmp.ne.s32.totalorder %s27, %s30
      %p36 = scmp.eq.s32.totalorder %s17, 0
      %p37 = por %p35, %p36
      %p38 = scmp.ne.s32.totalorder %s27, %s30
      %p39 = scmp.eq.s32.totalorder %s22, 1
      %p40 = por %p38, %p39
      %p41 = scmp.ne.s32.totalorder %s30, %s31
      %p42 = scmp.eq.s32.totalorder %s22, 0
      %p43 = por %p41, %p42
      %p44 = scmp.ne.s32.totalorder %s30, %s31
      %p45 = scmp.eq.s32.totalorder %s23, 1
      %p46 = por %p44, %p45
      %p48 = scmp.ne.s32.totalorder %s31, %s47
      %p49 = scmp.eq.s32.totalorder %s23, 0
      %p50 = por %p48, %p49
      %s51 = ssub.s32 %s17, %s24
      %p52 = scmp.eq.s32.totalorder %s51, 0
      %s54 = sadd.s32 %s53, 1
      %s55 = scalar_select %p52, %s53, %s54
      %p58 = pneg %p52
      %p59 = scmp.eq.s32.totalorder %s17, 1
      %p60 = por %p58, %p59
      %p61 = scmp.ne.s32.totalorder %s53, %s56
      %p62 = scmp.eq.s32.totalorder %s17, 0
      %p63 = por %p61, %p62
      %p64 = scmp.ne.s32.totalorder %s53, %s56
      %p65 = scmp.eq.s32.totalorder %s22, 1
      %p66 = por %p64, %p65
      %p67 = scmp.ne.s32.totalorder %s56, %s57
      %p68 = scmp.eq.s32.totalorder %s22, 0
      %p69 = por %p67, %p68
      %p70 = scmp.ne.s32.totalorder %s56, %s57
      %p71 = scmp.eq.s32.totalorder %s23, 1
      %p72 = por %p70, %p71
      %p74 = scmp.ne.s32.totalorder %s57, %s73
      %p75 = scmp.eq.s32.totalorder %s23, 0
      %p76 = por %p74, %p75
      %s78 = sadd.s32 %s77, 1
      %p81 = scmp.eq.s32.totalorder %s17, 1
      %p82 = scmp.ne.s32.totalorder %s77, %s79
      %p83 = scmp.eq.s32.totalorder %s17, 0
      %p84 = por %p82, %p83
      %p85 = scmp.ne.s32.totalorder %s77, %s79
      %p86 = scmp.eq.s32.totalorder %s22, 1
      %p87 = por %p85, %p86
      %p88 = scmp.ne.s32.totalorder %s79, %s80
      %p89 = scmp.eq.s32.totalorder %s22, 0
      %p90 = por %p88, %p89
      %p91 = scmp.ne.s32.totalorder %s79, %s80
      %p92 = scmp.eq.s32.totalorder %s23, 1
      %p93 = por %p91, %p92
      %p95 = scmp.ne.s32.totalorder %s80, %s94
      %p96 = scmp.eq.s32.totalorder %s23, 0
      %p97 = por %p95, %p96
      %s99 = sadd.s32 %s98, 1
      %p102 = scmp.eq.s32.totalorder %s17, 1
      %p103 = scmp.ne.s32.totalorder %s98, %s100
      %p104 = scmp.eq.s32.totalorder %s17, 0
      %p105 = por %p103, %p104
      %p106 = scmp.ne.s32.totalorder %s98, %s100
      %p107 = scmp.eq.s32.totalorder %s22, 1
      %p108 = por %p106, %p107
      %p109 = scmp.ne.s32.totalorder %s100, %s101
      %p110 = scmp.eq.s32.totalorder %s22, 0
      %p111 = por %p109, %p110
      %p112 = scmp.ne.s32.totalorder %s100, %s101
      %p113 = scmp.eq.s32.totalorder %s23, 1
      %p114 = por %p112, %p113
      %p116 = scmp.ne.s32.totalorder %s101, %s115
      %p117 = scmp.eq.s32.totalorder %s23, 0
      %p118 = por %p116, %p117
      %s120 = sadd.s32 %s119, 1
      %p123 = scmp.eq.s32.totalorder %s17, 1
      %p124 = scmp.ne.s32.totalorder %s119, %s121
      %p125 = scmp.eq.s32.totalorder %s17, 0
      %p126 = por %p124, %p125
      %p127 = scmp.ne.s32.totalorder %s119, %s121
      %p128 = scmp.eq.s32.totalorder %s22, 1
      %p129 = por %p127, %p128
      %p130 = scmp.ne.s32.totalorder %s121, %s122
      %p131 = scmp.eq.s32.totalorder %s22, 0
      %p132 = por %p130, %p131
      %p133 = scmp.ne.s32.totalorder %s121, %s122
      %p134 = scmp.eq.s32.totalorder %s23, 1
      %p135 = por %p133, %p134
      %p137 = scmp.ne.s32.totalorder %s122, %s136
      %p138 = scmp.eq.s32.totalorder %s23, 0
      %p139 = por %p137, %p138
      %s141 = sadd.s32 %s140, 1
      %p144 = scmp.eq.s32.totalorder %s17, 1
      %p145 = scmp.ne.s32.totalorder %s140, %s142
      %p146 = scmp.eq.s32.totalorder %s17, 0
      %p147 = por %p145, %p146
      %p148 = scmp.ne.s32.totalorder %s140, %s142
      %p149 = scmp.eq.s32.totalorder %s22, 1
      %p150 = por %p148, %p149
      %p151 = scmp.ne.s32.totalorder %s142, %s143
      %p152 = scmp.eq.s32.totalorder %s22, 0
      %p153 = por %p151, %p152
      %p154 = scmp.ne.s32.totalorder %s142, %s143
      %p155 = scmp.eq.s32.totalorder %s23, 1
      %p156 = por %p154, %p155
      %p158 = scmp.ne.s32.totalorder %s143, %s157
      %p159 = scmp.eq.s32.totalorder %s23, 0
      %p160 = por %p158, %p159
      %s162 = sadd.s32 %s161, 1
      %p165 = scmp.eq.s32.totalorder %s17, 1
      %p166 = scmp.ne.s32.totalorder %s161, %s163
      %p167 = scmp.eq.s32.totalorder %s17, 0
      %p168 = por %p166, %p167
      %p169 = scmp.ne.s32.totalorder %s161, %s163
      %p170 = scmp.eq.s32.totalorder %s22, 1
      %p171 = por %p169, %p170
      %p172 = scmp.ne.s32.totalorder %s163, %s164
      %p173 = scmp.eq.s32.totalorder %s22, 0
      %p174 = por %p172, %p173
      %p175 = scmp.ne.s32.totalorder %s163, %s164
      %p176 = scmp.eq.s32.totalorder %s23, 1
      %p177 = por %p175, %p176
      %p179 = scmp.ne.s32.totalorder %s164, %s178
      %p180 = scmp.eq.s32.totalorder %s23, 0
      %p181 = por %p179, %p180
      %s182 = ssub.s32 %s17, %s24
      %p183 = scmp.eq.s32.totalorder %s182, 0
      %s185 = sadd.s32 %s184, 1
      %s186 = scalar_select %p183, %s184, %s185
      %p189 = pneg %p183
      %p190 = scmp.eq.s32.totalorder %s17, 1
      %p191 = por %p189, %p190
      %p192 = scmp.ne.s32.totalorder %s184, %s187
      %p193 = scmp.eq.s32.totalorder %s17, 0
      %p194 = por %p192, %p193
      %p195 = scmp.ne.s32.totalorder %s184, %s187
      %p196 = scmp.eq.s32.totalorder %s22, 1
      %p197 = por %p195, %p196
      %p198 = scmp.ne.s32.totalorder %s187, %s188
      %p199 = scmp.eq.s32.totalorder %s22, 0
      %p200 = por %p198, %p199
      %p201 = scmp.ne.s32.totalorder %s187, %s188
      %p202 = scmp.eq.s32.totalorder %s23, 1
      %p203 = por %p201, %p202
      %p205 = scmp.ne.s32.totalorder %s188, %s204
      %p206 = scmp.eq.s32.totalorder %s23, 0
      %p207 = por %p205, %p206
      %p208 = scmp.le.s32.totalorder 1, %s17
      %p209 = scmp.lt.s32.totalorder %s17, 3
      %p210 = pnand %p208, %p209
      %p211 = pneg %p210
      // Predicated region
      $region9: #{tpu_custom_call.1} parent=5 // pred_check
        _
      $region10: #{tpu_custom_call.1} parent=5 // pred_check_branch
        %213 = sbr.rel (%p210) target = $region12
      $region11: #{tpu_custom_call.1} parent=5 // pred_region
        %s214 = ssub.s32 %s17, 1
        // Predicated region
        $region13: #{tpu_custom_call.1} parent=11 // pred_check
          %p215 = pneg %p90
        $region14: #{tpu_custom_call.1} parent=11 // pred_check_branch
          %217 = sbr.rel (%p215) target = $region16
        $region15: #{tpu_custom_call.1} parent=11 // pred_region
          %s219 = ssub.s32 256, 256
          %220 = vsyncadd [#allocation3], %s219
          %s221 = sshll.u32 [#allocation2], 4
          %s222 = int_to_ptr.vmem [resolvable:$true] %s221
          %227 = dma.hbm_to_vmem [thread:$0]  %s2, 256, %s222, [#allocation3], 64, 64, 4
        $region16: #{tpu_custom_call.1} parent=11 // pred_fallthru
          _
        // Predicated region
        $region17: #{tpu_custom_call.1} parent=11 // pred_check
          %p228 = pneg %p111
        $region18: #{tpu_custom_call.1} parent=11 // pred_check_branch
          %230 = sbr.rel (%p228) target = $region20
        $region19: #{tpu_custom_call.1} parent=11 // pred_region
          _
        $region20: #{tpu_custom_call.1} parent=11 // pred_fallthru
          _
        // Predicated region
        $region21: #{tpu_custom_call.1} parent=11 // pred_check
          %p231 = pneg %p132
        $region22: #{tpu_custom_call.1} parent=11 // pred_check_branch
          %233 = sbr.rel (%p231) target = $region24
        $region23: #{tpu_custom_call.1} parent=11 // pred_region
          _
        $region24: #{tpu_custom_call.1} parent=11 // pred_fallthru
          _
        // Predicated region
        $region25: #{tpu_custom_call.1} parent=11 // pred_check
          %p234 = pneg %p153
        $region26: #{tpu_custom_call.1} parent=11 // pred_check_branch
          %236 = sbr.rel (%p234) target = $region28
        $region27: #{tpu_custom_call.1} parent=11 // pred_region
          _
        $region28: #{tpu_custom_call.1} parent=11 // pred_fallthru
          _
        // Predicated region
        $region29: #{tpu_custom_call.1} parent=11 // pred_check
          %p237 = pneg %p174
        $region30: #{tpu_custom_call.1} parent=11 // pred_check_branch
          %239 = sbr.rel (%p237) target = $region32
        $region31: #{tpu_custom_call.1} parent=11 // pred_region
          _
        $region32: #{tpu_custom_call.1} parent=11 // pred_fallthru
          _
      $region12: #{tpu_custom_call.1} parent=5 // pred_fallthru
        _
      %p240 = scmp.lt.s32.totalorder %s17, 2
      // Predicated region
      $region33: #{tpu_custom_call.1} parent=5 // pred_check
        %p241 = pneg %p240
      $region34: #{tpu_custom_call.1} parent=5 // pred_check_branch
        %243 = sbr.rel (%p241) target = $region36
      $region35: #{tpu_custom_call.1} parent=5 // pred_region
        // Predicated region
        $region37: #{tpu_custom_call.1} parent=35 // pred_check
          %p244 = pneg %p37
        $region38: #{tpu_custom_call.1} parent=35 // pred_check_branch
          %246 = sbr.rel (%p244) target = $region40
        $region39: #{tpu_custom_call.1} parent=35 // pred_region
          %p247 = scmp.lt.s32.totalorder %s17, 1
          %s248 = scalar_select %p247, %s17, 1
          %s249 = smul.addr %s248, 8
          %s250 = scalar_lea.vmem %s0, %s249
        $region40: #{tpu_custom_call.1} parent=35 // pred_fallthru
          _
        // Predicated region
        $region41: #{tpu_custom_call.1} parent=35 // pred_check
          %p251 = pneg %p63
        $region42: #{tpu_custom_call.1} parent=35 // pred_check_branch
          %253 = sbr.rel (%p251) target = $region44
        $region43: #{tpu_custom_call.1} parent=35 // pred_region
          %p254 = scmp.lt.s32.totalorder %s17, 1
          %s255 = scalar_select %p254, %s17, 1
          %s256 = smul.addr %s255, 8
          %s257 = scalar_lea.vmem %s1, %s256
        $region44: #{tpu_custom_call.1} parent=35 // pred_fallthru
          _
      $region36: #{tpu_custom_call.1} parent=5 // pred_fallthru
        _
      %p258 = scmp.le.s32.totalorder 1, %s17
      %p259 = scmp.lt.s32.totalorder %s17, 3
      %p260 = pnand %p258, %p259
      %p261 = pneg %p260
      // Predicated region
      $region45: #{tpu_custom_call.1} parent=5 // pred_check
        _
      $region46: #{tpu_custom_call.1} parent=5 // pred_check_branch
        %263 = sbr.rel (%p260) target = $region48
      $region47: #{tpu_custom_call.1} parent=5 // pred_region
        %s264 = ssub.s32 %s17, 1
        // Predicated region
        $region49: #{tpu_custom_call.1} parent=47 // pred_check
          %p265 = pneg %p90
        $region50: #{tpu_custom_call.1} parent=47 // pred_check_branch
          %267 = sbr.rel (%p265) target = $region52
        $region51: #{tpu_custom_call.1} parent=47 // pred_region
          %268 = dma.done [#allocation3], 256
        $region52: #{tpu_custom_call.1} parent=47 // pred_fallthru
          _
        %p269 = scmp.lt.s32.totalorder %s22, 1
        %s270 = scalar_select %p269, %s22, 1
        %s271 = smul.addr %s270, 8
        %s272 = scalar_lea.vmem %s0, %s271
        %p273 = pneg %p43
        %p274 = pneg %p40
        %p275 = scmp.lt.s32.totalorder %s22, 1
        %s276 = scalar_select %p275, %s22, 1
        %s277 = smul.addr %s276, 8
        %s278 = scalar_lea.vmem %s1, %s277
        %p279 = pneg %p69
        %p280 = pneg %p66
        %p281 = pneg %p90
        %p282 = pneg %p87
        %p283 = pneg %p111
        %p284 = pneg %p108
        %p285 = pneg %p132
        %p286 = pneg %p129
        %p287 = pneg %p153
        %p288 = pneg %p150
        %p289 = pneg %p174
        %p290 = pneg %p171
        %p291 = pneg %p200
        %p292 = pneg %p197
        %s293 = sand.u32 %s187, 1
        %s294 = scalar_lea.sflag [#allocation4], %s293
        %s295 = sand.u32 %s187, 1
        %s296 = smul.addr %s295, 8
        %s297 = scalar_lea.vmem [#allocation5], %s296
        %p298 = scmp.lt.s32.totalorder %s22, 1
        %s299 = scalar_select %p298, %s22, 1
        %s300 = smul.addr %s299, 8
        %s301 = scalar_lea.vmem %s0, %s300
        %p302 = scmp.lt.s32.totalorder %s22, 1
        %s303 = scalar_select %p302, %s22, 1
        %s304 = smul.addr %s303, 8
        %s305 = scalar_lea.vmem %s1, %s304
        %v307 = vld [vmem:[%s301] sm:$0xff]
        %v308 = vpack.c.bf16 %v307, %v307
        %v309 = vld [vmem:[#allocation2] sm:$0xf]
        %v310 = vld [vmem:[#allocation2 + $0x4] sm:$0xf]
        %v311 = vld [vmem:[#allocation2 + $0x8] sm:$0xf]
        %v312 = vld [vmem:[#allocation2 + $0xc] sm:$0xf]
        %v313 = vld [vmem:[%s305] sm:$0xff]
        %v314 = vpack.c.bf16 %v313, %v313
        %v315 = vld [vmem:[%s3] sm:$0xf]
        %v316 = vld [vmem:[%s3 + $0x4] sm:$0xf]
        %v317 = vld [vmem:[%s3 + $0x8] sm:$0xf]
        %v318 = vld [vmem:[%s3 + $0xc] sm:$0xf]
        %v323 = vunpack.c.l.b16 %v315
        %v324 = vunpack.c.l.b16 %v316
        %v325 = vunpack.c.l.b16 %v317
        %v326 = vunpack.c.l.b16 %v318
        %v327 = vpack.c.b16 %v324, %v323
        %v328 = vpack.c.b16 %v326, %v325
        %vm331 = vcmask 261120
        %v333 = vsel %vm331, %v314, 0
        %335 = vmatprep.subr.bf16.mxu0 0
        %336 = vmatpush1.bf16.msra.mxu0 %v327
        %337 = vmatprep.subr.bf16.mxu0 0
        %338 = vmatpush1.bf16.msra.mxu0 %v328
        %339 = vmatprep.subr.bf16.mxu0 0
        %340 = vmatpush1.bf16.msra.mxu0 0
        %341 = vmatprep.subr.bf16.mxu0 0
        %342 = vmatpush1.bf16.msra.mxu0 0
        %343 = vmatprep.subr.bf16.mxu0 0
        %344 = vmatpush1.bf16.msra.mxu0 0
        %345 = vmatprep.subr.bf16.mxu0 0
        %346 = vmatpush1.bf16.msra.mxu0 0
        %347 = vmatprep.subr.bf16.mxu0 0
        %348 = vmatpush1.bf16.msra.mxu0 0
        %349 = vmatprep.subr.bf16.mxu0 0
        %350 = vmatpush1.bf16.msra.mxu0 0
        %351 = vmatprep.subr.bf16.mxu0 0
        %352 = vmatpush1.bf16.msra.mxu0 0
        %353 = vmatprep.subr.bf16.mxu0 0
        %354 = vmatpush1.bf16.msra.mxu0 0
        %355 = vmatprep.subr.bf16.mxu0 0
        %356 = vmatpush1.bf16.msra.mxu0 0
        %357 = vmatprep.subr.bf16.mxu0 0
        %358 = vmatpush1.bf16.msra.mxu0 0
        %359 = vmatprep.subr.bf16.mxu0 0
        %360 = vmatpush1.bf16.msra.mxu0 0
        %361 = vmatprep.subr.bf16.mxu0 0
        %362 = vmatpush1.bf16.msra.mxu0 0
        %363 = vmatprep.subr.bf16.mxu0 0
        %364 = vmatpush1.bf16.msra.mxu0 0
        %365 = vmatprep.subr.bf16.mxu0 0
        %366 = vmatpush1.bf16.msra.mxu0 0
        %367 = vmatprep.mubr.bf16.mxu0 0
        %368 = vmatmul.mubr.bf16.gmra.mrb[0].mxu0 %v333
        %v369 = vpop.f32.mrb[0].mxu0
        %v370 = vadd.f32 0.0, %v369
        %v371 = vpop.f32.mrb[0].mxu0
        %v372 = vpop.f32.mrb[0].mxu0
        %v373 = vpop.f32.mrb[0].mxu0
        %374 = vdwg.mxu0
        %v379 = vunpack.c.l.b16 %v309
        %v380 = vunpack.c.l.b16 %v310
        %v381 = vunpack.c.l.b16 %v311
        %v382 = vunpack.c.l.b16 %v312
        %v383 = vpack.c.b16 %v380, %v379
        %v384 = vpack.c.b16 %v382, %v381
        %v388 = vsel %vm331, %v308, 0
        %390 = vmatprep.subr.bf16.mxu0 0
        %391 = vmatpush1.bf16.msra.mxu0 %v383
        %392 = vmatprep.subr.bf16.mxu0 0
        %393 = vmatpush1.bf16.msra.mxu0 %v384
        %394 = vmatprep.subr.bf16.mxu0 0
        %395 = vmatpush1.bf16.msra.mxu0 0
        %396 = vmatprep.subr.bf16.mxu0 0
        %397 = vmatpush1.bf16.msra.mxu0 0
        %398 = vmatprep.subr.bf16.mxu0 0
        %399 = vmatpush1.bf16.msra.mxu0 0
        %400 = vmatprep.subr.bf16.mxu0 0
        %401 = vmatpush1.bf16.msra.mxu0 0
        %402 = vmatprep.subr.bf16.mxu0 0
        %403 = vmatpush1.bf16.msra.mxu0 0
        %404 = vmatprep.subr.bf16.mxu0 0
        %405 = vmatpush1.bf16.msra.mxu0 0
        %406 = vmatprep.subr.bf16.mxu0 0
        %407 = vmatpush1.bf16.msra.mxu0 0
        %408 = vmatprep.subr.bf16.mxu0 0
        %409 = vmatpush1.bf16.msra.mxu0 0
        %410 = vmatprep.subr.bf16.mxu0 0
        %411 = vmatpush1.bf16.msra.mxu0 0
        %412 = vmatprep.subr.bf16.mxu0 0
        %413 = vmatpush1.bf16.msra.mxu0 0
        %414 = vmatprep.subr.bf16.mxu0 0
        %415 = vmatpush1.bf16.msra.mxu0 0
        %416 = vmatprep.subr.bf16.mxu0 0
        %417 = vmatpush1.bf16.msra.mxu0 0
        %418 = vmatprep.subr.bf16.mxu0 0
        %419 = vmatpush1.bf16.msra.mxu0 0
        %420 = vmatprep.subr.bf16.mxu0 0
        %421 = vmatpush1.bf16.msra.mxu0 0
        %422 = vmatprep.mubr.bf16.mxu0 0
        %423 = vmatmul.mubr.bf16.gmra.mrb[0].mxu0 %v388
        %v424 = vpop.f32.mrb[0].mxu0
        %v425 = vadd.f32 %v370, %v424
        %v426 = vpop.f32.mrb[0].mxu0
        %v427 = vpop.f32.mrb[0].mxu0
        %v428 = vpop.f32.mrb[0].mxu0
        %429 = vdwg.mxu0
        %v430 = vld [vmem:[%s4] sm:$0x1]
        %v432 = vlaneseq
        %v433 = vshrl.u32 %v432, 7
        %v434 = vsub.s32 0, %v433
        %v435 = vrot.slane %v430, %v434
        %v437 = vadd.f32 %v425, %v435
        %vm438 = vcmp.gt.f32.partialorder %v437, 0.0
        %v439 = vmul.f32 %v437, 0.01
        %v440 = vsel %vm438, %v437, %v439
        %v441 = vpack.c.bf16 %v440, %v440
        %v442 = vld [vmem:[%s5] sm:$0xf]
        %v443 = vld [vmem:[%s5 + $0x4] sm:$0xf]
        %v444 = vld [vmem:[%s5 + $0x8] sm:$0xf]
        %v445 = vld [vmem:[%s5 + $0xc] sm:$0xf]
        %v446 = vld [vmem:[%s5 + $0x10] sm:$0xf]
        %v447 = vld [vmem:[%s5 + $0x14] sm:$0xf]
        %v448 = vld [vmem:[%s5 + $0x18] sm:$0xf]
        %v449 = vld [vmem:[%s5 + $0x1c] sm:$0xf]
        %v450 = vld [vmem:[%s6] sm:$0x1]
        %v452 = vlaneseq
        %v453 = vshrl.u32 %v452, 7
        %v454 = vsub.s32 0, %v453
        %v455 = vrot.slane %v450, %v454
        %v465 = vunpack.c.l.b16 %v442
        %v466 = vunpack.c.l.b16 %v443
        %v467 = vunpack.c.l.b16 %v444
        %v468 = vunpack.c.l.b16 %v445
        %v469 = vunpack.c.l.b16 %v446
        %v470 = vunpack.c.l.b16 %v447
        %v471 = vunpack.c.l.b16 %v448
        %v472 = vunpack.c.l.b16 %v449
        %v473 = vpack.c.b16 %v466, %v465
        %v474 = vpack.c.b16 %v468, %v467
        %v475 = vpack.c.b16 %v470, %v469
        %v476 = vpack.c.b16 %v472, %v471
        %vm481 = vcmask 523264
        %v483 = vsel %vm481, %v441, 0
        %485 = vmatprep.subr.bf16.mxu0 0
        %486 = vmatpush1.bf16.msra.mxu0 %v473
        %487 = vmatprep.subr.bf16.mxu0 0
        %488 = vmatpush1.bf16.msra.mxu0 %v474
        %489 = vmatprep.subr.bf16.mxu0 0
        %490 = vmatpush1.bf16.msra.mxu0 %v475
        %491 = vmatprep.subr.bf16.mxu0 0
        %492 = vmatpush1.bf16.msra.mxu0 %v476
        %493 = vmatprep.subr.bf16.mxu0 0
        %494 = vmatpush1.bf16.msra.mxu0 0
        %495 = vmatprep.subr.bf16.mxu0 0
        %496 = vmatpush1.bf16.msra.mxu0 0
        %497 = vmatprep.subr.bf16.mxu0 0
        %498 = vmatpush1.bf16.msra.mxu0 0
        %499 = vmatprep.subr.bf16.mxu0 0
        %500 = vmatpush1.bf16.msra.mxu0 0
        %501 = vmatprep.subr.bf16.mxu0 0
        %502 = vmatpush1.bf16.msra.mxu0 0
        %503 = vmatprep.subr.bf16.mxu0 0
        %504 = vmatpush1.bf16.msra.mxu0 0
        %505 = vmatprep.subr.bf16.mxu0 0
        %506 = vmatpush1.bf16.msra.mxu0 0
        %507 = vmatprep.subr.bf16.mxu0 0
        %508 = vmatpush1.bf16.msra.mxu0 0
        %509 = vmatprep.subr.bf16.mxu0 0
        %510 = vmatpush1.bf16.msra.mxu0 0
        %511 = vmatprep.subr.bf16.mxu0 0
        %512 = vmatpush1.bf16.msra.mxu0 0
        %513 = vmatprep.subr.bf16.mxu0 0
        %514 = vmatpush1.bf16.msra.mxu0 0
        %515 = vmatprep.subr.bf16.mxu0 0
        %516 = vmatpush1.bf16.msra.mxu0 0
        %517 = vmatprep.mubr.bf16.mxu0 0
        %518 = vmatmul.mubr.bf16.gmra.mrb[0].mxu0 %v483
        %v519 = vpop.f32.mrb[0].mxu0
        %v520 = vadd.f32 %v455, %v519
        %v521 = vpop.f32.mrb[0].mxu0
        %v522 = vpop.f32.mrb[0].mxu0
        %v523 = vpop.f32.mrb[0].mxu0
        %524 = vdwg.mxu0
        %v525 = vxor.u32 %v520, 2147483648
        %v526 = vmul.f32 %v525, 1.442695
        %v527 = vpow.pop %v526
        %v528 = vadd.f32 %v527, 1.0
        %v529 = vrcp.pop %v528
        %v530 = vmul.f32 1.0, %v529
        %vm531 = vcmask 130048
        %532 = vst.msk [vmem:[%s297] sm:$0xff] %vm531, %v530
        %s533 = sand.u32 %s187, 1
        %s534 = scalar_lea.sflag [#allocation4], %s533
        %s535 = sand.u32 %s187, 1
        %s536 = smul.addr %s535, 8
        %s537 = scalar_lea.vmem [#allocation5], %s536
        // Predicated region
        $region53: #{tpu_custom_call.1} parent=47 // pred_check
          %p538 = pneg %p197
        $region54: #{tpu_custom_call.1} parent=47 // pred_check_branch
          %540 = sbr.rel (%p538) target = $region56
        $region55: #{tpu_custom_call.1} parent=47 // pred_region
          %s542 = ssub.s32 128, 128
          %543 = vsyncadd %s534, %s542
          %s544 = smul.addr %s22, 128
          %s545 = scalar_lea.hbm %s7, %s544
          %s547 = sshll.u32 %s537, 4
          %s548 = int_to_ptr.vmem [resolvable:$true] %s547
          %550 = dma.vmem_to_hbm [thread:$0]  %s548, 128, %s545, %s534
        $region56: #{tpu_custom_call.1} parent=47 // pred_fallthru
          _
      $region48: #{tpu_custom_call.1} parent=5 // pred_fallthru
        _
      %p551 = scmp.le.s32.totalorder 2, %s17
      // Predicated region
      $region57: #{tpu_custom_call.1} parent=5 // pred_check
        %p552 = pneg %p551
      $region58: #{tpu_custom_call.1} parent=5 // pred_check_branch
        %554 = sbr.rel (%p552) target = $region60
      $region59: #{tpu_custom_call.1} parent=5 // pred_region
        %s555 = ssub.s32 %s17, 2
        // Predicated region
        $region61: #{tpu_custom_call.1} parent=59 // pred_check
          %p556 = pneg %p203
        $region62: #{tpu_custom_call.1} parent=59 // pred_check_branch
          %558 = sbr.rel (%p556) target = $region64
        $region63: #{tpu_custom_call.1} parent=59 // pred_region
          %s559 = sand.u32 %s188, 1
          %s560 = scalar_lea.sflag [#allocation4], %s559
          %s561 = sand.u32 %s188, 1
          %s562 = smul.addr %s561, 8
          %s563 = scalar_lea.vmem [#allocation5], %s562
          %564 = dma.done %s560, 128
        $region64: #{tpu_custom_call.1} parent=59 // pred_fallthru
          _
      $region60: #{tpu_custom_call.1} parent=5 // pred_fallthru
        _
    $region6: #{tpu_custom_call.1} parent=1 // loop_footer
      %s21 = sadd.s32 1, %s17
    $region7: #{tpu_custom_call.1} parent=1 // loop_footer_branch
      %16 = sbr.rel target = $region3
    $region8: #{tpu_custom_call.1} parent=1 // loop_exit
      _
    %565 = vsyncpa [#allocation3], 1
    %s566 = scalar_lea.sflag [#allocation3], 1
    %567 = vsyncpa %s566, 1
    %568 = vsyncpa [#allocation4], 1
    %s569 = scalar_lea.sflag [#allocation4], 1
    %570 = vsyncpa %s569, 1

</llo_original>
